<compile_context>
chip_gen: v7x
topology: tpu7x:2x2x1
jax: 0.10.0
libtpu: 0.0.40
codegen_flags: <defaults>
</compile_context>

<pallas_src>
import jax
import jax.numpy as jnp
from jax.experimental import pallas as pl
from jax.experimental.pallas import tpu as pltpu


def _autopool_kernel(alpha_ref, dec_ref, out_ref):
    # alpha_ref: (1, tc)   dec_ref: (bb, Tdim, tc)   out_ref: (bb, tc)
    d = dec_ref[...].astype(jnp.float32)                 # keep HBM traffic in input dtype
    a = alpha_ref[...].astype(jnp.float32)[None]         # (1, 1, tc) per-class scale
    s = d * a                                            # scaled = alpha * decision
    # Numerically-stable softmax over the pooled axis (axis=1), fused with the
    # weighted sum:  out = sum(d * e) / sum(e).  No full-size `w` temporary.
    m = jnp.max(s, axis=1, keepdims=True)                # (bb, 1, tc)
    e = jnp.exp(s - m)                                   # (bb, Tdim, tc)
    num = jnp.sum(d * e, axis=1)                         # (bb, tc)
    den = jnp.sum(e, axis=1)                             # (bb, tc)
    # approx reciprocal runs on the otherwise-idle EUP slot; operand is only (bb, tc).
    out_ref[...] = (num * pl.reciprocal(den, approx=True)).astype(out_ref.dtype)


def _pick_tiles(B, Tdim, C, itemsize):
    """Pick (batch_block, class_block): class block lane-dense (multiple of 128
    or full extent), batch block sublane-aligned (multiple of 8 or full extent),
    with each input tile targeting ~2 MiB."""
    target = 2 * 1024 * 1024
    hard_cap = 8 * 1024 * 1024

    tc = C if C <= 512 else 512                          # 512 % 128 == 0
    row_bytes = Tdim * tc * itemsize

    bb = max(1, min(B, target // max(1, row_bytes)))
    if bb < B:
        if B >= 8 and 8 * row_bytes <= hard_cap:
            bb = max(8, (bb // 8) * 8)                   # sublane-aligned output tile
        # else: keep bb (possibly < 8) — masked stores, still correct.
        # TODO(synk): extremely long pooled axes (Tdim*tc*4B >> VMEM) would need
        # an online-softmax split over Tdim; not required at these sizes.
    return bb, tc


def autopool(logits, decision, alpha, pooldim=1):
    """Pallas implementation of AutoPool.forward(logits, decision)."""
    assert pooldim == 1, "kernel is written for pooldim=1 (B, Tdim, C) layout"
    del logits                                           # unused by the forward pass
    B, Tdim, C = decision.shape
    alpha2d = jnp.asarray(alpha, dtype=decision.dtype).reshape(1, C)

    bb, tc = _pick_tiles(B, Tdim, C, decision.dtype.itemsize)
    grid = (pl.cdiv(B, bb), pl.cdiv(C, tc))

    return pl.pallas_call(
        _autopool_kernel,
        out_shape=jax.ShapeDtypeStruct((B, C), decision.dtype),
        grid_spec=pltpu.PrefetchScalarGridSpec(
            num_scalar_prefetch=0,
            grid=grid,
            in_specs=[
                pl.BlockSpec((1, tc), lambda b, c: (0, c)),            # alpha
                pl.BlockSpec((bb, Tdim, tc), lambda b, c: (b, 0, c)),  # decision
            ],
            out_specs=pl.BlockSpec((bb, tc), lambda b, c: (b, c)),
        ),
        compiler_params=pltpu.CompilerParams(
            dimension_semantics=("parallel", "parallel"),   # both axes independent
            vmem_limit_bytes=48 * 1024 * 1024,              # above v5e's 16 MiB default,
        ),                                                  # safe on v7x's 64 MiB physical
    )(alpha2d, decision)


def autopool_ref(logits, decision, alpha, pooldim=1):
    del logits
    w = jax.nn.softmax(alpha * decision, axis=pooldim)
    return jnp.sum(decision * w, axis=pooldim)


if __name__ == "__main__":
    key = jax.random.PRNGKey(0)
    k1, k2, k3, k4, k5 = jax.random.split(key, 5)

    # Small shape matching the module defaults (outputdim=10, pooldim=1).
    B, Tdim, C = 2, 8, 10
    logits = jax.random.normal(k1, (B, Tdim, C), dtype=jnp.float32)
    decision = jax.random.uniform(k2, (B, Tdim, C), dtype=jnp.float32)
    alpha = 1.0 + 0.1 * jax.random.normal(k3, (C,), dtype=jnp.float32)

    out = jax.block_until_ready(autopool(logits, decision, alpha, pooldim=1))
    ref = autopool_ref(logits, decision, alpha, pooldim=1)
    assert out.shape == (B, C)
    assert jnp.allclose(out, ref, atol=1e-3, rtol=1e-3), "mismatch vs reference (small)"

    # Medium shape to exercise batch blocking + class tiling (partial last class tile).
    B2, T2, C2 = 16, 32, 640
    dec2 = jax.random.uniform(k4, (B2, T2, C2), dtype=jnp.float32)
    alpha2 = 1.0 + 0.1 * jax.random.normal(k5, (C2,), dtype=jnp.float32)
    out2 = jax.block_until_ready(autopool(None, dec2, alpha2, pooldim=1))
    ref2 = autopool_ref(None, dec2, alpha2, pooldim=1)
    assert out2.shape == (B2, C2)
    assert jnp.allclose(out2, ref2, atol=1e-3, rtol=1e-3), "mismatch vs reference (medium)"

    print("KERNEL_OK")
</pallas_src>

<mosaic_0001>
module attributes {stable_mosaic.version = 11 : i64} {
  func.func @_autopool_kernel(%arg0: i32, %arg1: i32, %arg2: memref<1x10xf32, #tpu.memory_space<vmem>>, %arg3: memref<2x8x10xf32, #tpu.memory_space<vmem>>, %arg4: memref<2x10xf32, #tpu.memory_space<vmem>>) attributes {dimension_semantics = [#tpu.dimension_semantics<parallel>, #tpu.dimension_semantics<parallel>], iteration_bounds = array<i64: 1, 1>, scalar_prefetch = 0 : i64, scratch_operands = 0 : i64, tpu.core_type = #tpu.core_type<tc>, window_params = [{transform_indices = @transform_0, window_bounds = array<i64: 1, 10>}, {transform_indices = @transform_1, window_bounds = array<i64: 2, 8, 10>}, {transform_indices = @transform_2, window_bounds = array<i64: 2, 10>}]} {
    %c0 = arith.constant 0 : index
    %c0_0 = arith.constant 0 : index
    %c0_1 = arith.constant 0 : index
    %0 = vector.load %arg3[%c0, %c0_0, %c0_1] : memref<2x8x10xf32, #tpu.memory_space<vmem>>, vector<2x8x10xf32>
    %c0_2 = arith.constant 0 : index
    %c0_3 = arith.constant 0 : index
    %1 = vector.load %arg2[%c0_2, %c0_3] : memref<1x10xf32, #tpu.memory_space<vmem>>, vector<1x10xf32>
    %2 = vector.shape_cast %1 : vector<1x10xf32> to vector<1x1x10xf32>
    %3 = vector.broadcast %2 : vector<1x1x10xf32> to vector<2x8x10xf32>
    %4 = arith.mulf %0, %3 : vector<2x8x10xf32>
    %cst = arith.constant dense<0xFF800000> : vector<2x10xf32>
    %5 = vector.multi_reduction <maximumf>, %4, %cst [1] : vector<2x8x10xf32> to vector<2x10xf32>
    %6 = vector.shape_cast %5 : vector<2x10xf32> to vector<2x1x10xf32>
    %7 = vector.broadcast %6 : vector<2x1x10xf32> to vector<2x8x10xf32>
    %8 = arith.subf %4, %7 : vector<2x8x10xf32>
    %9 = math.exp %8 : vector<2x8x10xf32>
    %10 = arith.mulf %0, %9 : vector<2x8x10xf32>
    %cst_4 = arith.constant dense<0.000000e+00> : vector<2x10xf32>
    %11 = vector.multi_reduction <add>, %10, %cst_4 [1] : vector<2x8x10xf32> to vector<2x10xf32>
    %cst_5 = arith.constant dense<0.000000e+00> : vector<2x10xf32>
    %12 = vector.multi_reduction <add>, %9, %cst_5 [1] : vector<2x8x10xf32> to vector<2x10xf32>
    %13 = tpu.reciprocal %12 {approx = true} : vector<2x10xf32> -> vector<2x10xf32>
    %14 = arith.mulf %11, %13 : vector<2x10xf32>
    %c0_6 = arith.constant 0 : index
    %c0_7 = arith.constant 0 : index
    %15 = vector.load %arg4[%c0_6, %c0_7] : memref<2x10xf32, #tpu.memory_space<vmem>>, vector<2x10xf32>
    tpu.vector_store %arg4[%c0_6, %c0_7], %14 {strides = array<i32>} : memref<2x10xf32, #tpu.memory_space<vmem>>, vector<2x10xf32>,
    return
  }
  func.func @transform_0(%arg0: i32, %arg1: i32) -> (i32, i32) {
    %c0_i32 = arith.constant 0 : i32
    %c0_i32_0 = arith.constant 0 : i32
    return %c0_i32, %arg1 : i32, i32
  }
  func.func @transform_1(%arg0: i32, %arg1: i32) -> (i32, i32, i32) {
    %c0_i32 = arith.constant 0 : i32
    %c0_i32_0 = arith.constant 0 : i32
    return %arg0, %c0_i32, %arg1 : i32, i32, i32
  }
  func.func @transform_2(%arg0: i32, %arg1: i32) -> (i32, i32) {
    %c0_i32 = arith.constant 0 : i32
    return %arg0, %arg1 : i32, i32
  }
}

</mosaic_0001>

<llo_original>
// kernel: tpu_custom_call.1
$region0: #{tpu_custom_call.1}
  #allocation0 [shape = 'u32[]', space=smem, size = 0x4, offset = 0x4, fixed_abs, tag = 'smem constant byte address 0x4 - core index']
  #allocation1 [shape = 'u32[144,128]{1,0:T(1,128)}', space=vmem, size = 0x12000, scoped, tag = 'internal scratch']
  %s0 = inlined_call_operand.hbm [shape: f32[1,10], index: 0, kind: input, shape index: {}]
  %s1 = inlined_call_operand.hbm [shape: f32[2,8,10], index: 1, kind: input, shape index: {}]
  %s2 = inlined_call_operand.hbm [shape: f32[2,10], index: 2, kind: output, shape index: {}]
  %s3 = sld [smem:[#allocation0]]
  $region26: #{tpu_custom_call.1} parent=0
    _
  %s5 = ssub.s32 1, %s3
  %s6 = scalar_select 0, %s5, %s3
  $region1: #{tpu_custom_call.1} parent=0
    #allocation2 [shape = 'u8[512]{0}', space=vmem, size = 0x400, scoped, tag = 'input window, operand 0, single buffered']
    #allocation3 [shape = 's32[1]{0}', space=sflag, size = 0x4, scoped, tag = 'scoped memory for tpu_custom_call.1']
    #allocation4 [shape = 's32[1]{0}', space=sflag, size = 0x4, scoped, tag = 'scoped memory for tpu_custom_call.1']
    #allocation5 [shape = 'u8[8192]{0}', space=vmem, size = 0x2000, scoped, tag = 'input window, operand 1, single buffered']
    #allocation6 [shape = 's32[1]{0}', space=sflag, size = 0x4, scoped, tag = 'scoped memory for tpu_custom_call.1']
    #allocation7 [shape = 'u8[1024]{0}', space=vmem, size = 0x400, scoped, tag = 'output window, operand 0, single buffered']
    %7 = vsyncpa [#allocation3], 0
    %8 = vsyncpa [#allocation6], 0
    %9 = vsyncpa [#allocation4], 0
    // Predicated region
    $region2: #{tpu_custom_call.1} parent=1 // pred_check
      _
    $region3: #{tpu_custom_call.1} parent=1 // pred_check_branch
      %11 = sbr.rel (0) target = $region5
    $region4: #{tpu_custom_call.1} parent=1 // pred_region
      %s13 = ssub.s32 16, 16
      %14 = vsyncadd [#allocation3], %s13
      %s16 = sshll.u32 [#allocation2], 4
      %s17 = int_to_ptr.vmem [resolvable:$true] %s16
      %19 = dma.hbm_to_vmem [thread:$0]  %s0, 16, %s17, [#allocation3]
    $region5: #{tpu_custom_call.1} parent=1 // pred_fallthru
      _
    // Predicated region
    $region6: #{tpu_custom_call.1} parent=1 // pred_check
      _
    $region7: #{tpu_custom_call.1} parent=1 // pred_check_branch
      %21 = sbr.rel (0) target = $region9
    $region8: #{tpu_custom_call.1} parent=1 // pred_region
      %s23 = ssub.s32 256, 256
      %24 = vsyncadd [#allocation6], %s23
      %s25 = sshll.u32 [#allocation5], 4
      %s26 = int_to_ptr.vmem [resolvable:$true] %s25
      %31 = dma.hbm_to_vmem [thread:$0]  %s1, 256, %s26, [#allocation6], 128, 128, 8
    $region9: #{tpu_custom_call.1} parent=1 // pred_fallthru
      _
    // Predicated region
    $region10: #{tpu_custom_call.1} parent=1 // pred_check
      _
    $region11: #{tpu_custom_call.1} parent=1 // pred_check_branch
      %33 = sbr.rel (0) target = $region13
    $region12: #{tpu_custom_call.1} parent=1 // pred_region
      %34 = dma.done [#allocation3], 16
    $region13: #{tpu_custom_call.1} parent=1 // pred_fallthru
      _
    // Predicated region
    $region14: #{tpu_custom_call.1} parent=1 // pred_check
      _
    $region15: #{tpu_custom_call.1} parent=1 // pred_check_branch
      %36 = sbr.rel (0) target = $region17
    $region16: #{tpu_custom_call.1} parent=1 // pred_region
      %37 = dma.done [#allocation6], 256
    $region17: #{tpu_custom_call.1} parent=1 // pred_fallthru
      _
    %v38 = vld [vmem:[#allocation5] sm:$0xff]
    %v39 = vld [vmem:[#allocation5 + $0x8] sm:$0xff]
    %v40 = vld [vmem:[#allocation2] sm:$0x1]
    %v42 = vlaneseq
    %v43 = vshrl.u32 %v42, 7
    %v44 = vsub.s32 0, %v43
    %v45 = vrot.slane %v40, %v44
    %v47 = vmul.f32 %v38, %v45
    %v48 = vmul.f32 %v39, %v45
    %vm49 = vcmask 80896
    %v50 = vsel %vm49, %v47, -inf
    %v51 = vrot.slane %v50, 4
    %v52 = vmax.f32 %v50, %v51
    %v53 = vrot.slane %v52, 2
    %v54 = vmax.f32 %v52, %v53
    %v55 = vrot.slane %v54, 1
    %v56 = vmax.f32 %v54, %v55
    %v57 = vsel %vm49, %v48, -inf
    %v58 = vrot.slane %v57, 4
    %v59 = vmax.f32 %v57, %v58
    %v60 = vrot.slane %v59, 2
    %v61 = vmax.f32 %v59, %v60
    %v62 = vrot.slane %v61, 1
    %v63 = vmax.f32 %v61, %v62
    %v64 = vsub.f32 %v47, %v56
    %v65 = vsub.f32 %v48, %v63
    %v66 = vmul.f32 %v64, 1.442695
    %v67 = vpow.pop %v66
    %v68 = vmul.f32 %v65, 1.442695
    %v69 = vpow.pop %v68
    %v70 = vmul.f32 %v38, %v67
    %v71 = vmul.f32 %v39, %v69
    %v72 = vsel %vm49, %v70, 0.0
    %v73 = vrot.slane %v72, 4
    %v74 = vadd.f32 %v72, %v73
    %v75 = vrot.slane %v74, 2
    %v76 = vadd.f32 %v74, %v75
    %v77 = vrot.slane %v76, 1
    %v78 = vadd.f32 %v76, %v77
    %v79 = vsel %vm49, %v71, 0.0
    %v80 = vrot.slane %v79, 4
    %v81 = vadd.f32 %v79, %v80
    %v82 = vrot.slane %v81, 2
    %v83 = vadd.f32 %v81, %v82
    %v84 = vrot.slane %v83, 1
    %v85 = vadd.f32 %v83, %v84
    %v86 = vsel %vm49, %v67, 0.0
    %v87 = vrot.slane %v86, 4
    %v88 = vadd.f32 %v86, %v87
    %v89 = vrot.slane %v88, 2
    %v90 = vadd.f32 %v88, %v89
    %v91 = vrot.slane %v90, 1
    %v92 = vadd.f32 %v90, %v91
    %v93 = vsel %vm49, %v69, 0.0
    %v94 = vrot.slane %v93, 4
    %v95 = vadd.f32 %v93, %v94
    %v96 = vrot.slane %v95, 2
    %v97 = vadd.f32 %v95, %v96
    %v98 = vrot.slane %v97, 1
    %v99 = vadd.f32 %v97, %v98
    %v100 = vrcp.pop %v92
    %v101 = vrcp.pop %v99
    %v102 = vmul.f32 %v78, %v100
    %v103 = vmul.f32 %v85, %v101
    %vm106 = vcmask 1041409
    %v107 = vsel %vm106, %v103, %v102
    %vm109 = vcmask 74752
    %110 = vst.msk [vmem:[#allocation7] sm:$0x3] %vm109, %v107
    // Predicated region
    $region18: #{tpu_custom_call.1} parent=1 // pred_check
      _
    $region19: #{tpu_custom_call.1} parent=1 // pred_check_branch
      %112 = sbr.rel (0) target = $region21
    $region20: #{tpu_custom_call.1} parent=1 // pred_region
      %s114 = ssub.s32 32, 32
      %115 = vsyncadd [#allocation4], %s114
      %s117 = sshll.u32 [#allocation7], 4
      %s118 = int_to_ptr.vmem [resolvable:$true] %s117
      %120 = dma.vmem_to_hbm [thread:$0]  %s118, 32, %s2, [#allocation4]
    $region21: #{tpu_custom_call.1} parent=1 // pred_fallthru
      _
    // Predicated region
    $region22: #{tpu_custom_call.1} parent=1 // pred_check
      _
    $region23: #{tpu_custom_call.1} parent=1 // pred_check_branch
      %122 = sbr.rel (0) target = $region25
    $region24: #{tpu_custom_call.1} parent=1 // pred_region
      %123 = dma.done [#allocation4], 32
    $region25: #{tpu_custom_call.1} parent=1 // pred_fallthru
      _
    %124 = vsyncpa [#allocation3], 1
    %125 = vsyncpa [#allocation6], 1
    %126 = vsyncpa [#allocation4], 1

</llo_original>
